<compile_context>
chip_gen: v6e
topology: v6e:2x2x1
jax: 0.10.0
libtpu: 0.0.40
codegen_flags: <defaults>
</compile_context>

<pallas_src>
import jax
import jax.numpy as jnp
import numpy as np
from jax.experimental import pallas as pl
from jax.experimental.pallas import tpu as pltpu

KS = 4
STRIDE = 2
PAD = 1
BN_EPS = 1e-5

# phase ph -> ((dh, kh), ...): output row 2*i+ph receives contributions from
# padded-input row i+dh through kernel tap kh (derived from ih=(oh+pad-kh)/2).
_PH_TAPS = {0: ((1, 1), (0, 3)), 1: ((1, 2), (2, 0))}


def _round_up(x, n):
    return (x + n - 1) // n * n


def _cdiv(a, b):
    return -(-a // b)


def _vmem_capacity_bytes():
    try:
        return int(pltpu.get_tpu_info().vmem_capacity_bytes)
    except Exception:
        return 64 << 20        # conservative default (v7x per-TensorCore VMEM)


# --------------------------------------------------------------------------
# Kernel: phase-decomposed complex transposed conv (stacked-K 2-matmul form)
# fused with per-tile BN partial statistics.
#   p        : (K2, TM) bf16 patches, K2 = 2*9*Cin ([real ; imag] stacked
#              along K), lane-dense along TM
#   wr, wi   : (C4, K2) bf16 weights, C4 = 4 phases * Cout (row-padded)
#              wr = [Ar | -Ai],  wi = [Ai | Ar]
#   or_, oi_ : (C4, TM) bf16 conv outputs (lane-dense stores)
#   st       : (1, C4, 4) f32 [sum_r, sumsq_r, sum_i, sumsq_i] per tile
# --------------------------------------------------------------------------
def _conv_stats_kernel(p_ref, wr_ref, wi_ref, or_ref, oi_ref, st_ref):
    p = p_ref[...]
    out_r = jnp.dot(wr_ref[...], p, preferred_element_type=jnp.float32)
    out_i = jnp.dot(wi_ref[...], p, preferred_element_type=jnp.float32)
    # BN partial sums in f32, taken before the bf16 down-cast of the output.
    # TODO(synk): the stats block's last dim of 4 forces masked stores / XLU
    # reductions; <2% effect, revisit only if the bundle shows pressure there.
    st_ref[0] = jnp.concatenate(
        [jnp.sum(out_r, axis=1, keepdims=True),
         jnp.sum(out_r * out_r, axis=1, keepdims=True),
         jnp.sum(out_i, axis=1, keepdims=True),
         jnp.sum(out_i * out_i, axis=1, keepdims=True)], axis=1)
    or_ref[...] = out_r.astype(jnp.bfloat16)
    oi_ref[...] = out_i.astype(jnp.bfloat16)


# --------------------------------------------------------------------------
# Wrapper-side glue (plain JAX): 3x3 im2col (transposed layout) and
# phase-packed weight matrices.
# --------------------------------------------------------------------------
def _patches_t(x):
    """(N, Cin, H, W) -> (9*Cin, N*H*W) bf16 patches of the 3x3 neighbourhood."""
    # TODO(synk): im2col is still materialized in HBM by XLA (~9x input size);
    # moving it in-kernel (overlapping-window halo DMA + in-VMEM shifted
    # views) would remove the largest remaining HBM term.
    n, c, h, w = x.shape
    xp = jnp.pad(x, ((0, 0), (0, 0), (1, 1), (1, 1)))
    cols = [xp[:, :, dh:dh + h, dw:dw + w] for dh in range(3) for dw in range(3)]
    p = jnp.stack(cols, axis=0)                 # (9, N, C, H, W)
    p = jnp.transpose(p, (0, 2, 1, 3, 4))       # (9, C, N, H, W)
    return p.reshape(9 * c, n * h * w).astype(jnp.bfloat16)


def _phase_weight_t(wt):
    """ConvTranspose2d weight (Cin, Cout, 4, 4) -> (4*Cout, 9*Cin) f32 matrix.

    Row = phase*Cout + cout, col = (dh*3+dw)*Cin + cin  (matches _patches_t).
    """
    cin, cout = wt.shape[0], wt.shape[1]
    a = jnp.zeros((4, cout, 3, 3, cin), jnp.float32)
    for ph in (0, 1):
        for pw in (0, 1):
            pidx = 2 * ph + pw
            for dh, kh in _PH_TAPS[ph]:
                for dw, kw in _PH_TAPS[pw]:
                    a = a.at[pidx, :, dh, dw, :].set(wt[:, :, kh, kw].T)
    return a.reshape(4 * cout, 9 * cin)


def _pick_tile(m, k2, c4p):
    """VMEM-budget- and megacore-aware M-tile selection (per generation)."""
    vmem = _vmem_capacity_bytes()
    budget = min(int(vmem * 0.55), 80 << 20)          # headroom below physical VMEM
    fixed = 2 * 2 * c4p * k2 * 2                      # 2 bf16 weight mats, 2 buffers
    per_col = 2 * (k2 * 2) + 2 * 2 * (c4p * 2)        # patch tile + 2 out tiles, bf16, 2 buffers
    cap = max(128, ((budget - fixed) // max(per_col, 1)) // 128 * 128)
    tm = _round_up(max(1, _cdiv(m, 8)), 128)          # aim for ~8 tiles
    tm = max(tm, min(512, _round_up(_cdiv(m, 2), 128)))   # but keep tiles big while >=2 tiles (v7x megacore)
    tm = min(tm, cap, 8192)
    m_pad = _round_up(max(m, tm), tm)
    return tm, m_pad, m_pad // tm, vmem


def complex_unet_up(x_r, x_i, params, skip_r=None, skip_i=None):
    """Forward of ComplexUnetUp. Inputs are NCHW float32 real/imag parts."""
    if skip_r is not None:
        x_r = jnp.concatenate([x_r, skip_r], axis=1)   # torch.cat((x, skip), 1)
        x_i = jnp.concatenate([x_i, skip_i], axis=1)
    n, cin, h, w = x_r.shape
    ouc = params["wt_r"].shape[1]
    oh, ow = STRIDE * h, STRIDE * w
    k2 = 2 * 9 * cin                       # stacked [real ; imag] patch rows
    c4 = 4 * ouc
    c4p = _round_up(c4, 16)                # bf16-friendly sublane multiple
    m = n * h * w
    tm, m_pad, n_tiles, vmem = _pick_tile(m, k2, c4p)

    # Patches, lane-dense along M, [real ; imag] stacked along K. Padded
    # columns are all-zero, so they add nothing to the BN sums (we divide by
    # the true pixel count below).
    p = jnp.concatenate([_patches_t(x_r), _patches_t(x_i)], axis=0)
    if m_pad != m:
        p = jnp.pad(p, ((0, 0), (0, m_pad - m)))

    # Phase-packed weights in the stacked-K complex form:
    #   out_r = [Ar | -Ai] @ [p_r ; p_i],   out_i = [Ai | Ar] @ [p_r ; p_i]
    a_r = _phase_weight_t(params["wt_r"])
    a_i = _phase_weight_t(params["wt_i"])

    def _pack(a):
        return jnp.pad(a, ((0, c4p - c4), (0, 0))).astype(jnp.bfloat16)

    w_r = _pack(jnp.concatenate([a_r, -a_i], axis=1))
    w_i = _pack(jnp.concatenate([a_i, a_r], axis=1))
    # Conv biases intentionally not added: per-channel constants added before
    # (training-mode) BatchNorm are removed exactly by the mean subtraction.
    # TODO(synk): reinstate / fold into the BN shift if eval-mode BN is needed.

    # TODO(synk): for very large Cin (k2 in the several-thousands) add K as an
    # inner "arbitrary" grid axis with an f32 VMEM accumulator so weights and
    # patch tiles are streamed instead of fully resident (v7x 64 MiB VMEM).
    conv_r, conv_i, part = pl.pallas_call(
        _conv_stats_kernel,
        out_shape=(jax.ShapeDtypeStruct((c4p, m_pad), jnp.bfloat16),
                   jax.ShapeDtypeStruct((c4p, m_pad), jnp.bfloat16),
                   jax.ShapeDtypeStruct((n_tiles, c4p, 4), jnp.float32)),
        grid_spec=pltpu.PrefetchScalarGridSpec(
            num_scalar_prefetch=0,
            grid=(n_tiles,),
            in_specs=[
                pl.BlockSpec((k2, tm), lambda i: (0, i)),
                pl.BlockSpec((c4p, k2), lambda i: (0, 0)),
                pl.BlockSpec((c4p, k2), lambda i: (0, 0)),
            ],
            out_specs=[
                pl.BlockSpec((c4p, tm), lambda i: (0, i)),
                pl.BlockSpec((c4p, tm), lambda i: (0, i)),
                pl.BlockSpec((1, c4p, 4), lambda i: (i, 0, 0)),
            ]),
        compiler_params=pltpu.CompilerParams(
            dimension_semantics=("parallel",),
            vmem_limit_bytes=min(int(vmem * 0.7), 100 << 20)),
    )(p, w_r, w_i)

    # Finish BN statistics on the tiny (c4, 4) partials: reduce over tiles and
    # the 4 output phases; var = E[x^2] - mean^2 (clamped).
    # TODO(synk): single-pass variance can cancel when |mean| >> std; a Welford
    # combine over the (n_tiles, c4p, 4) partials would be more robust.
    st = jnp.sum(part, axis=0)[:c4].reshape(4, ouc, 4).sum(axis=0)   # (ouc, 4)
    cnt = jnp.float32(4 * m)                        # = N * OH * OW per channel
    mean_r = st[:, 0] / cnt
    var_r = jnp.maximum(st[:, 1] / cnt - mean_r ** 2, 0.0)
    mean_i = st[:, 2] / cnt
    var_i = jnp.maximum(st[:, 3] / cnt - mean_i ** 2, 0.0)
    sc_r = params["gamma_r"] * jax.lax.rsqrt(var_r + BN_EPS)
    sc_i = params["gamma_i"] * jax.lax.rsqrt(var_i + BN_EPS)
    sh_r = params["beta_r"] - mean_r * sc_r
    sh_i = params["beta_i"] - mean_i * sc_i
    # TODO(synk): BN running-stat (momentum) buffer updates are not modeled;
    # only the training-mode forward normalization is implemented.

    # Normalize + ComplexRELU + depth-to-space fused into one XLA elementwise
    # + transpose pass (no extra Pallas round-trip over the activation).
    def _finish(conv, scale, shift):
        y = conv[:c4, :m].astype(jnp.float32)
        y = y * jnp.tile(scale, 4)[:, None] + jnp.tile(shift, 4)[:, None]
        y = jnp.maximum(y, 0.0)                      # ComplexRELU per branch
        y = y.reshape(2, 2, ouc, n, h, w)            # (ph, pw, co, n, i, j)
        y = jnp.transpose(y, (3, 2, 4, 0, 5, 1))     # (n, co, i, ph, j, pw)
        return y.reshape(n, ouc, oh, ow)

    return _finish(conv_r, sc_r, sh_r), _finish(conv_i, sc_i, sh_i)


# --------------------------------------------------------------------------
# Pure-JAX f32 reference (for correctness check).
# --------------------------------------------------------------------------
def _ref_convT(x, wt, ks, stride, pad):
    wd = jnp.transpose(jnp.flip(jnp.flip(wt, 2), 3), (1, 0, 2, 3))  # OIHW
    return jax.lax.conv_general_dilated(
        x, wd, window_strides=(1, 1),
        padding=[(ks - 1 - pad, ks - 1 - pad)] * 2,
        lhs_dilation=(stride, stride),
        dimension_numbers=("NCHW", "OIHW", "NCHW"))


def ref_complex_unet_up(x_r, x_i, params, skip_r=None, skip_i=None):
    if skip_r is not None:
        x_r = jnp.concatenate([x_r, skip_r], axis=1)
        x_i = jnp.concatenate([x_i, skip_i], axis=1)
    br = params["b_r"][None, :, None, None]
    bi = params["b_i"][None, :, None, None]
    fr_r = _ref_convT(x_r, params["wt_r"], KS, STRIDE, PAD) + br
    fr_i = _ref_convT(x_i, params["wt_r"], KS, STRIDE, PAD) + br
    fi_r = _ref_convT(x_r, params["wt_i"], KS, STRIDE, PAD) + bi
    fi_i = _ref_convT(x_i, params["wt_i"], KS, STRIDE, PAD) + bi
    cr = fr_r - fi_i
    ci = fr_i + fi_r

    def bn(x, g, b):
        mu = jnp.mean(x, axis=(0, 2, 3), keepdims=True)
        var = jnp.mean((x - mu) ** 2, axis=(0, 2, 3), keepdims=True)
        return ((x - mu) * jax.lax.rsqrt(var + BN_EPS)
                * g[None, :, None, None] + b[None, :, None, None])

    yr = jnp.maximum(bn(cr, params["gamma_r"], params["beta_r"]), 0.0)
    yi = jnp.maximum(bn(ci, params["gamma_i"], params["beta_i"]), 0.0)
    return yr, yi


if __name__ == "__main__":
    key = jax.random.PRNGKey(0)
    n, cx, cs, h = 2, 2, 2, 16          # x: 2 channels, skip: 2 channels
    inc, ouc = cx + cs, 8               # inc = concatenated channels
    keys = jax.random.split(key, 12)

    x_r = jax.random.normal(keys[0], (n, cx, h, h), jnp.float32)
    x_i = jax.random.normal(keys[1], (n, cx, h, h), jnp.float32)
    s_r = jax.random.normal(keys[2], (n, cs, h, h), jnp.float32)
    s_i = jax.random.normal(keys[3], (n, cs, h, h), jnp.float32)

    std = 1.0 / np.sqrt(inc * KS * KS)
    params = {
        # ConvTranspose2d weights: (inc, ouc, ks, ks); separate real/imag convs.
        "wt_r": jax.random.uniform(keys[4], (inc, ouc, KS, KS), jnp.float32, -std, std),
        "wt_i": jax.random.uniform(keys[5], (inc, ouc, KS, KS), jnp.float32, -std, std),
        "b_r": jax.random.uniform(keys[6], (ouc,), jnp.float32, -std, std),
        "b_i": jax.random.uniform(keys[7], (ouc,), jnp.float32, -std, std),
        # NaiveComplexBatchNorm2d affine params (bn_r / bn_i).
        "gamma_r": 1.0 + 0.1 * jax.random.normal(keys[8], (ouc,), jnp.float32),
        "beta_r": 0.1 * jax.random.normal(keys[9], (ouc,), jnp.float32),
        "gamma_i": 1.0 + 0.1 * jax.random.normal(keys[10], (ouc,), jnp.float32),
        "beta_i": 0.1 * jax.random.normal(keys[11], (ouc,), jnp.float32),
    }

    fwd = jax.jit(complex_unet_up)
    y_r, y_i = fwd(x_r, x_i, params, s_r, s_i)
    jax.block_until_ready((y_r, y_i))

    # bf16 patches/weights/intermediates (f32 accumulation) vs. all-f32 ref:
    # post-BN values are O(1), so a few-percent tolerance covers bf16 rounding.
    r_r, r_i = ref_complex_unet_up(x_r, x_i, params, s_r, s_i)
    np.testing.assert_allclose(np.asarray(y_r), np.asarray(r_r), rtol=5e-2, atol=5e-2)
    np.testing.assert_allclose(np.asarray(y_i), np.asarray(r_i), rtol=5e-2, atol=5e-2)
    print("KERNEL_OK")
</pallas_src>

<mosaic_0001>
module attributes {stable_mosaic.version = 11 : i64} {
  func.func @_conv_stats_kernel(%arg0: i32, %arg1: memref<72x256xbf16, #tpu.memory_space<vmem>>, %arg2: memref<32x72xbf16, #tpu.memory_space<vmem>>, %arg3: memref<32x72xbf16, #tpu.memory_space<vmem>>, %arg4: memref<32x256xbf16, #tpu.memory_space<vmem>>, %arg5: memref<32x256xbf16, #tpu.memory_space<vmem>>, %arg6: memref<1x32x4xf32, #tpu.memory_space<vmem>>) attributes {dimension_semantics = [#tpu.dimension_semantics<parallel>], iteration_bounds = array<i64: 2>, scalar_prefetch = 0 : i64, scratch_operands = 0 : i64, tpu.core_type = #tpu.core_type<tc>, window_params = [{transform_indices = @transform_0, window_bounds = array<i64: 72, 256>}, {pipeline_mode = #tpu.pipeline_mode<synchronous>, transform_indices = @transform_1, window_bounds = array<i64: 32, 72>}, {pipeline_mode = #tpu.pipeline_mode<synchronous>, transform_indices = @transform_2, window_bounds = array<i64: 32, 72>}, {transform_indices = @transform_3, window_bounds = array<i64: 32, 256>}, {transform_indices = @transform_4, window_bounds = array<i64: 32, 256>}, {transform_indices = @transform_5, window_bounds = array<i64: 1, 32, 4>}]} {
    %c0 = arith.constant 0 : index
    %c0_0 = arith.constant 0 : index
    %0 = vector.load %arg1[%c0, %c0_0] : memref<72x256xbf16, #tpu.memory_space<vmem>>, vector<72x256xbf16>
    %c0_1 = arith.constant 0 : index
    %c0_2 = arith.constant 0 : index
    %1 = vector.load %arg2[%c0_1, %c0_2] : memref<32x72xbf16, #tpu.memory_space<vmem>>, vector<32x72xbf16>
    %cst = arith.constant dense<0.000000e+00> : vector<32x256xf32>
    %2 = tpu.matmul %1, %0, %cst {dimension_numbers = #tpu.dot_dimension_numbers<[1], [0], [0], [1], [0, 0, 1, 1], [], []>} : vector<32x72xbf16>, vector<72x256xbf16>, vector<32x256xf32> -> vector<32x256xf32>
    %c0_3 = arith.constant 0 : index
    %c0_4 = arith.constant 0 : index
    %3 = vector.load %arg3[%c0_3, %c0_4] : memref<32x72xbf16, #tpu.memory_space<vmem>>, vector<32x72xbf16>
    %cst_5 = arith.constant dense<0.000000e+00> : vector<32x256xf32>
    %4 = tpu.matmul %3, %0, %cst_5 {dimension_numbers = #tpu.dot_dimension_numbers<[1], [0], [0], [1], [0, 0, 1, 1], [], []>} : vector<32x72xbf16>, vector<72x256xbf16>, vector<32x256xf32> -> vector<32x256xf32>
    %cst_6 = arith.constant dense<0.000000e+00> : vector<32xf32>
    %5 = vector.multi_reduction <add>, %2, %cst_6 [1] : vector<32x256xf32> to vector<32xf32>
    %6 = vector.shape_cast %5 : vector<32xf32> to vector<32x1xf32>
    %7 = arith.mulf %2, %2 : vector<32x256xf32>
    %cst_7 = arith.constant dense<0.000000e+00> : vector<32xf32>
    %8 = vector.multi_reduction <add>, %7, %cst_7 [1] : vector<32x256xf32> to vector<32xf32>
    %9 = vector.shape_cast %8 : vector<32xf32> to vector<32x1xf32>
    %cst_8 = arith.constant dense<0.000000e+00> : vector<32xf32>
    %10 = vector.multi_reduction <add>, %4, %cst_8 [1] : vector<32x256xf32> to vector<32xf32>
    %11 = vector.shape_cast %10 : vector<32xf32> to vector<32x1xf32>
    %12 = arith.mulf %4, %4 : vector<32x256xf32>
    %cst_9 = arith.constant dense<0.000000e+00> : vector<32xf32>
    %13 = vector.multi_reduction <add>, %12, %cst_9 [1] : vector<32x256xf32> to vector<32xf32>
    %14 = vector.shape_cast %13 : vector<32xf32> to vector<32x1xf32>
    %15 = tpu.concatenate %6, %9, %11, %14 in 1 : vector<32x1xf32>, vector<32x1xf32>, vector<32x1xf32>, vector<32x1xf32> -> vector<32x4xf32>
    %c0_10 = arith.constant 0 : index
    %c0_11 = arith.constant 0 : index
    %c0_12 = arith.constant 0 : index
    %16 = vector.load %arg6[%c0_10, %c0_11, %c0_12] : memref<1x32x4xf32, #tpu.memory_space<vmem>>, vector<1x32x4xf32>
    %17 = vector.shape_cast %16 : vector<1x32x4xf32> to vector<32x4xf32>
    %18 = vector.shape_cast %15 : vector<32x4xf32> to vector<1x32x4xf32>
    tpu.vector_store %arg6[%c0_10, %c0_11, %c0_12], %18 {strides = array<i32>} : memref<1x32x4xf32, #tpu.memory_space<vmem>>, vector<1x32x4xf32>,
    %19 = arith.truncf %2 : vector<32x256xf32> to vector<32x256xbf16>
    %c0_13 = arith.constant 0 : index
    %c0_14 = arith.constant 0 : index
    %20 = vector.load %arg4[%c0_13, %c0_14] : memref<32x256xbf16, #tpu.memory_space<vmem>>, vector<32x256xbf16>
    tpu.vector_store %arg4[%c0_13, %c0_14], %19 {strides = array<i32>} : memref<32x256xbf16, #tpu.memory_space<vmem>>, vector<32x256xbf16>,
    %21 = arith.truncf %4 : vector<32x256xf32> to vector<32x256xbf16>
    %c0_15 = arith.constant 0 : index
    %c0_16 = arith.constant 0 : index
    %22 = vector.load %arg5[%c0_15, %c0_16] : memref<32x256xbf16, #tpu.memory_space<vmem>>, vector<32x256xbf16>
    tpu.vector_store %arg5[%c0_15, %c0_16], %21 {strides = array<i32>} : memref<32x256xbf16, #tpu.memory_space<vmem>>, vector<32x256xbf16>,
    return
  }
  func.func @transform_0(%arg0: i32) -> (i32, i32) {
    %c0_i32 = arith.constant 0 : i32
    %c0_i32_0 = arith.constant 0 : i32
    return %c0_i32, %arg0 : i32, i32
  }
  func.func @transform_1(%arg0: i32) -> (i32, i32) {
    %c0_i32 = arith.constant 0 : i32
    %c0_i32_0 = arith.constant 0 : i32
    %c0_i32_1 = arith.constant 0 : i32
    return %c0_i32, %c0_i32_0 : i32, i32
  }
  func.func @transform_2(%arg0: i32) -> (i32, i32) {
    %c0_i32 = arith.constant 0 : i32
    %c0_i32_0 = arith.constant 0 : i32
    %c0_i32_1 = arith.constant 0 : i32
    return %c0_i32, %c0_i32_0 : i32, i32
  }
  func.func @transform_3(%arg0: i32) -> (i32, i32) {
    %c0_i32 = arith.constant 0 : i32
    %c0_i32_0 = arith.constant 0 : i32
    return %c0_i32, %arg0 : i32, i32
  }
  func.func @transform_4(%arg0: i32) -> (i32, i32) {
    %c0_i32 = arith.constant 0 : i32
    %c0_i32_0 = arith.constant 0 : i32
    return %c0_i32, %arg0 : i32, i32
  }
  func.func @transform_5(%arg0: i32) -> (i32, i32, i32) {
    %c0_i32 = arith.constant 0 : i32
    %c0_i32_0 = arith.constant 0 : i32
    %c0_i32_1 = arith.constant 0 : i32
    return %arg0, %c0_i32, %c0_i32_0 : i32, i32, i32
  }
}

</mosaic_0001>

<llo_original>
// kernel: tile.38
$region0: #{tile.38}
  #allocation0 [shape = 's32[1]{0}', space=sflag, size = 0x4, scoped, tag = 'scoped memory for tile.38']
  %s0 = inlined_call_operand.vmem [shape: f32[8], index: 0, kind: input, shape index: {}]
  %s1 = inlined_call_operand.vmem [shape: f32[4,8], index: 1, kind: output, shape index: {}]
  // Predicated region
  $region2: #{tile.38} parent=0 // pred_check
    _
  $region3: #{tile.38} parent=0 // pred_check_branch
    %3 = sbr.rel (0) target = $region5
  $region4: #{tile.38} parent=0 // pred_region
    _
  $region5: #{tile.38} parent=0 // pred_fallthru
    _
  %v4 = vld [vmem:[%s0] ss:$0 sm:$0xff]
  %5 = vst [vmem:[%s1] sm:$0xf] %v4

// kernel: complex_unet_up.1
$region0: #{complex_unet_up.1}
  #allocation0 [shape = 'u32[]', space=smem, size = 0x4, offset = 0x4, fixed_abs, tag = 'smem constant byte address 0x4 - core index']
  #allocation1 [shape = 'u32[144,128]{1,0:T(1,128)}', space=vmem, size = 0x12000, scoped, tag = 'internal scratch']
  %s0 = inlined_call_operand.vmem [shape: bf16[72,512], index: 0, kind: input, shape index: {}]
  %s1 = inlined_call_operand.vmem [shape: bf16[32,72], index: 1, kind: input, shape index: {}]
  %s2 = inlined_call_operand.vmem [shape: bf16[32,72], index: 2, kind: input, shape index: {}]
  %s3 = inlined_call_operand.vmem [shape: bf16[32,512], index: 3, kind: output, shape index: {0}]
  %s4 = inlined_call_operand.vmem [shape: bf16[32,512], index: 4, kind: output, shape index: {1}]
  %s5 = inlined_call_operand.vmem [shape: f32[2,32,4], index: 5, kind: output, shape index: {2}]
  %6 = xla_tuple %s3, %s4, %s5
  %s7 = sld [smem:[#allocation0]]
  $region167: #{complex_unet_up.1} parent=0
    _
  %s9 = ssub.s32 1, %s7
  %s10 = scalar_select 0, %s9, %s7
  $region1: #{complex_unet_up.1} parent=0
    #allocation2 [shape = 'u8[73728]{0}', space=vmem, size = 0x12000, scoped, tag = 'input window, operand 0']
    #allocation3 [shape = 'u8[32768]{0}', space=vmem, size = 0x8000, scoped, tag = 'output window, operand 0']
    #allocation4 [shape = 'u8[32768]{0}', space=vmem, size = 0x8000, scoped, tag = 'output window, operand 1']
    loop: start=0, step=1, limit=4
    $region2: #{complex_unet_up.1} parent=1 // loop_pre_header
      _
    $region3: #{complex_unet_up.1} parent=1 // loop_header
      %s12 = sphi 0, %s16
      %p13 = scmp.ge.s32.totalorder %s12, 4
      %s22 = sphi 0, %s24
      %s25 = sphi 0, %s22
      %s26 = sphi 0, %s25
      %s42 = sphi 0, %s26
      %s46 = sphi 0, %s46
      %s48 = sphi 0, %s46
      %s49 = sphi 0, %s48
      %s63 = sphi 0, %s49
      %s67 = sphi 0, %s67
      %s69 = sphi 0, %s67
      %s70 = sphi 0, %s69
      %s84 = sphi 0, %s70
      %s90 = sphi 0, %s92
      %s93 = sphi 0, %s90
      %s94 = sphi 0, %s93
      %s110 = sphi 0, %s94
      %s116 = sphi 0, %s118
      %s119 = sphi 0, %s116
      %s120 = sphi 0, %s119
      %s136 = sphi 0, %s120
      %s142 = sphi 0, %s144
      %s145 = sphi 0, %s142
      %s146 = sphi 0, %s145
      %s162 = sphi 0, %s146
    $region4: #{complex_unet_up.1} parent=1 // loop_header_branch
      %15 = sbr.rel (%p13) target = $region8
    $region5: #{complex_unet_up.1} parent=1 // loop_body
      %s17 = ssub.s32 %s12, 1
      %s18 = ssub.s32 %s12, 2
      %s19 = sadd.s32 %s12, 1
      %s20 = ssub.s32 %s12, %s19
      %p21 = scmp.eq.s32.totalorder %s20, 0
      %s23 = sadd.s32 %s22, 1
      %s24 = scalar_select %p21, %s22, %s23
      %p27 = pneg %p21
      %p28 = scmp.eq.s32.totalorder %s12, 1
      %p29 = por %p27, %p28
      %p30 = scmp.ne.s32.totalorder %s22, %s25
      %p31 = scmp.eq.s32.totalorder %s12, 0
      %p32 = por %p30, %p31
      %p33 = scmp.ne.s32.totalorder %s22, %s25
      %p34 = scmp.eq.s32.totalorder %s17, 1
      %p35 = por %p33, %p34
      %p36 = scmp.ne.s32.totalorder %s25, %s26
      %p37 = scmp.eq.s32.totalorder %s17, 0
      %p38 = por %p36, %p37
      %p39 = scmp.ne.s32.totalorder %s25, %s26
      %p40 = scmp.eq.s32.totalorder %s18, 1
      %p41 = por %p39, %p40
      %p43 = scmp.ne.s32.totalorder %s26, %s42
      %p44 = scmp.eq.s32.totalorder %s18, 0
      %p45 = por %p43, %p44
      %s47 = sadd.s32 %s46, 1
      %p50 = scmp.eq.s32.totalorder %s12, 1
      %p51 = scmp.ne.s32.totalorder %s46, %s48
      %p52 = scmp.eq.s32.totalorder %s12, 0
      %p53 = por %p51, %p52
      %p54 = scmp.ne.s32.totalorder %s46, %s48
      %p55 = scmp.eq.s32.totalorder %s17, 1
      %p56 = por %p54, %p55
      %p57 = scmp.ne.s32.totalorder %s48, %s49
      %p58 = scmp.eq.s32.totalorder %s17, 0
      %p59 = por %p57, %p58
      %p60 = scmp.ne.s32.totalorder %s48, %s49
      %p61 = scmp.eq.s32.totalorder %s18, 1
      %p62 = por %p60, %p61
      %p64 = scmp.ne.s32.totalorder %s49, %s63
      %p65 = scmp.eq.s32.totalorder %s18, 0
      %p66 = por %p64, %p65
      %s68 = sadd.s32 %s67, 1
      %p71 = scmp.eq.s32.totalorder %s12, 1
      %p72 = scmp.ne.s32.totalorder %s67, %s69
      %p73 = scmp.eq.s32.totalorder %s12, 0
      %p74 = por %p72, %p73
      %p75 = scmp.ne.s32.totalorder %s67, %s69
      %p76 = scmp.eq.s32.totalorder %s17, 1
      %p77 = por %p75, %p76
      %p78 = scmp.ne.s32.totalorder %s69, %s70
      %p79 = scmp.eq.s32.totalorder %s17, 0
      %p80 = por %p78, %p79
      %p81 = scmp.ne.s32.totalorder %s69, %s70
      %p82 = scmp.eq.s32.totalorder %s18, 1
      %p83 = por %p81, %p82
      %p85 = scmp.ne.s32.totalorder %s70, %s84
      %p86 = scmp.eq.s32.totalorder %s18, 0
      %p87 = por %p85, %p86
      %s88 = ssub.s32 %s12, %s19
      %p89 = scmp.eq.s32.totalorder %s88, 0
      %s91 = sadd.s32 %s90, 1
      %s92 = scalar_select %p89, %s90, %s91
      %p95 = pneg %p89
      %p96 = scmp.eq.s32.totalorder %s12, 1
      %p97 = por %p95, %p96
      %p98 = scmp.ne.s32.totalorder %s90, %s93
      %p99 = scmp.eq.s32.totalorder %s12, 0
      %p100 = por %p98, %p99
      %p101 = scmp.ne.s32.totalorder %s90, %s93
      %p102 = scmp.eq.s32.totalorder %s17, 1
      %p103 = por %p101, %p102
      %p104 = scmp.ne.s32.totalorder %s93, %s94
      %p105 = scmp.eq.s32.totalorder %s17, 0
      %p106 = por %p104, %p105
      %p107 = scmp.ne.s32.totalorder %s93, %s94
      %p108 = scmp.eq.s32.totalorder %s18, 1
      %p109 = por %p107, %p108
      %p111 = scmp.ne.s32.totalorder %s94, %s110
      %p112 = scmp.eq.s32.totalorder %s18, 0
      %p113 = por %p111, %p112
      %s114 = ssub.s32 %s12, %s19
      %p115 = scmp.eq.s32.totalorder %s114, 0
      %s117 = sadd.s32 %s116, 1
      %s118 = scalar_select %p115, %s116, %s117
      %p121 = pneg %p115
      %p122 = scmp.eq.s32.totalorder %s12, 1
      %p123 = por %p121, %p122
      %p124 = scmp.ne.s32.totalorder %s116, %s119
      %p125 = scmp.eq.s32.totalorder %s12, 0
      %p126 = por %p124, %p125
      %p127 = scmp.ne.s32.totalorder %s116, %s119
      %p128 = scmp.eq.s32.totalorder %s17, 1
      %p129 = por %p127, %p128
      %p130 = scmp.ne.s32.totalorder %s119, %s120
      %p131 = scmp.eq.s32.totalorder %s17, 0
      %p132 = por %p130, %p131
      %p133 = scmp.ne.s32.totalorder %s119, %s120
      %p134 = scmp.eq.s32.totalorder %s18, 1
      %p135 = por %p133, %p134
      %p137 = scmp.ne.s32.totalorder %s120, %s136
      %p138 = scmp.eq.s32.totalorder %s18, 0
      %p139 = por %p137, %p138
      %s140 = ssub.s32 %s12, %s19
      %p141 = scmp.eq.s32.totalorder %s140, 0
      %s143 = sadd.s32 %s142, 1
      %s144 = scalar_select %p141, %s142, %s143
      %p147 = pneg %p141
      %p148 = scmp.eq.s32.totalorder %s12, 1
      %p149 = por %p147, %p148
      %p150 = scmp.ne.s32.totalorder %s142, %s145
      %p151 = scmp.eq.s32.totalorder %s12, 0
      %p152 = por %p150, %p151
      %p153 = scmp.ne.s32.totalorder %s142, %s145
      %p154 = scmp.eq.s32.totalorder %s17, 1
      %p155 = por %p153, %p154
      %p156 = scmp.ne.s32.totalorder %s145, %s146
      %p157 = scmp.eq.s32.totalorder %s17, 0
      %p158 = por %p156, %p157
      %p159 = scmp.ne.s32.totalorder %s145, %s146
      %p160 = scmp.eq.s32.totalorder %s18, 1
      %p161 = por %p159, %p160
      %p163 = scmp.ne.s32.totalorder %s146, %s162
      %p164 = scmp.eq.s32.totalorder %s18, 0
      %p165 = por %p163, %p164
      %p166 = scmp.le.s32.totalorder 1, %s12
      %p167 = scmp.lt.s32.totalorder %s12, 3
      %p168 = pnand %p166, %p167
      %p169 = pneg %p168
      // Predicated region
      $region9: #{complex_unet_up.1} parent=5 // pred_check
        _
      $region10: #{complex_unet_up.1} parent=5 // pred_check_branch
        %171 = sbr.rel (%p168) target = $region12
      $region11: #{complex_unet_up.1} parent=5 // pred_region
        %s172 = ssub.s32 %s12, 1
        // Predicated region
        $region13: #{complex_unet_up.1} parent=11 // pred_check
          %p173 = pneg %p59
        $region14: #{complex_unet_up.1} parent=11 // pred_check_branch
          %175 = sbr.rel (%p173) target = $region16
        $region15: #{complex_unet_up.1} parent=11 // pred_region
          _
        $region16: #{complex_unet_up.1} parent=11 // pred_fallthru
          _
        // Predicated region
        $region17: #{complex_unet_up.1} parent=11 // pred_check
          %p176 = pneg %p80
        $region18: #{complex_unet_up.1} parent=11 // pred_check_branch
          %178 = sbr.rel (%p176) target = $region20
        $region19: #{complex_unet_up.1} parent=11 // pred_region
          _
        $region20: #{complex_unet_up.1} parent=11 // pred_fallthru
          _
      $region12: #{complex_unet_up.1} parent=5 // pred_fallthru
        _
      %p179 = scmp.lt.s32.totalorder %s12, 2
      // Predicated region
      $region21: #{complex_unet_up.1} parent=5 // pred_check
        %p180 = pneg %p179
      $region22: #{complex_unet_up.1} parent=5 // pred_check_branch
        %182 = sbr.rel (%p180) target = $region24
      $region23: #{complex_unet_up.1} parent=5 // pred_region
        // Predicated region
        $region25: #{complex_unet_up.1} parent=23 // pred_check
          %p183 = pneg %p32
        $region26: #{complex_unet_up.1} parent=23 // pred_check_branch
          %185 = sbr.rel (%p183) target = $region28
        $region27: #{complex_unet_up.1} parent=23 // pred_region
          %s186 = sand.u32 %s22, 1
          %s187 = sand.u32 %s22, 1
          %s188 = smul.addr %s187, 72
          %s189 = scalar_lea.vmem [#allocation2], %s188
          %s190 = smul.u32 2, %s12
          %s191 = smul.addr %s190, 4
          %s192 = scalar_lea.vmem %s0, %s191
          // Predicated region
          $region29: #{complex_unet_up.1} parent=27 // pred_check
            _
          $region30: #{complex_unet_up.1} parent=27 // pred_check_branch
            %194 = sbr.rel (0) target = $region32
          $region31: #{complex_unet_up.1} parent=27 // pred_region
            // Predicated region
            $region33: #{complex_unet_up.1} parent=31 // pred_check
              _
            $region34: #{complex_unet_up.1} parent=31 // pred_check_branch
              %196 = sbr.rel (0) target = $region36
            $region35: #{complex_unet_up.1} parent=31 // pred_region
              // Predicated region
              $region48: #{complex_unet_up.1} parent=35 // pred_check
                _
              $region49: #{complex_unet_up.1} parent=35 // pred_check_branch
                %228 = sbr.rel (0) target = $region51
              $region50: #{complex_unet_up.1} parent=35 // pred_region
                loop: start=0, step=1, limit=1
                $region52: #{complex_unet_up.1} parent=50 // loop_pre_header
                  _
                $region53: #{complex_unet_up.1} parent=50 // loop_header
                  %s230 = sphi 0, %s234
                  %p231 = scmp.ge.s32.totalorder %s230, 1
                  %s235 = sphi %s192, %s192
                  %s236 = sphi %s189, %s189
                $region54: #{complex_unet_up.1} parent=50 // loop_header_branch
                  %233 = sbr.rel (%p231) target = $region58
                $region55: #{complex_unet_up.1} parent=50 // loop_body
                  %v237 = vld [vmem:[%s235] sm:$0xff]
                  %238 = vst [vmem:[%s236] sm:$0xff] %v237
                  %v239 = vld [vmem:[%s235 + $0x10] sm:$0xff]
                  %240 = vst [vmem:[%s236 + $0x8] sm:$0xff] %v239
                  %v241 = vld [vmem:[%s235 + $0x20] sm:$0xff]
                  %242 = vst [vmem:[%s236 + $0x10] sm:$0xff] %v241
                  %v243 = vld [vmem:[%s235 + $0x30] sm:$0xff]
                  %244 = vst [vmem:[%s236 + $0x18] sm:$0xff] %v243
                  %v245 = vld [vmem:[%s235 + $0x40] sm:$0xff]
                  %246 = vst [vmem:[%s236 + $0x20] sm:$0xff] %v245
                  %v247 = vld [vmem:[%s235 + $0x50] sm:$0xff]
                  %248 = vst [vmem:[%s236 + $0x28] sm:$0xff] %v247
                  %v249 = vld [vmem:[%s235 + $0x60] sm:$0xff]
                  %250 = vst [vmem:[%s236 + $0x30] sm:$0xff] %v249
                  %v251 = vld [vmem:[%s235 + $0x70] sm:$0xff]
                  %252 = vst [vmem:[%s236 + $0x38] sm:$0xff] %v251
                  %v253 = vld [vmem:[%s235 + $0x80] sm:$0xff]
                  %254 = vst [vmem:[%s236 + $0x40] sm:$0xff] %v253
                $region56: #{complex_unet_up.1} parent=50 // loop_footer
                  %s234 = sadd.s32 1, %s230
                $region57: #{complex_unet_up.1} parent=50 // loop_footer_branch
                  %229 = sbr.rel target = $region53
                $region58: #{complex_unet_up.1} parent=50 // loop_exit
                  _
              $region51: #{complex_unet_up.1} parent=35 // pred_fallthru
                _
              // Predicated region
              $region59: #{complex_unet_up.1} parent=35 // pred_check
                _
              $region60: #{complex_unet_up.1} parent=35 // pred_check_branch
                %256 = sbr.rel target = $region62
              $region61: #{complex_unet_up.1} parent=35 // pred_region
                _
              $region62: #{complex_unet_up.1} parent=35 // pred_fallthru
                _
            $region36: #{complex_unet_up.1} parent=31 // pred_fallthru
              _
            // Predicated region
            $region37: #{complex_unet_up.1} parent=31 // pred_check
              _
            $region38: #{complex_unet_up.1} parent=31 // pred_check_branch
              %198 = sbr.rel target = $region40
            $region39: #{complex_unet_up.1} parent=31 // pred_region
              %s200 = ssub.s32 256, 1
              loop: start=0, step=1, limit=1
              $region41: #{complex_unet_up.1} parent=39 // loop_pre_header
                _
              $region42: #{complex_unet_up.1} parent=39 // loop_header
                %s202 = sphi 0, %s206
                %p203 = scmp.ge.s32.totalorder %s202, 1
                %s207 = sphi %s192, %s192
                %s208 = sphi %s189, %s189
              $region43: #{complex_unet_up.1} parent=39 // loop_header_branch
                %205 = sbr.rel (%p203) target = $region47
              $region44: #{complex_unet_up.1} parent=39 // loop_body
                %v209 = vld [vmem:[%s207] sm:%s200]
                %210 = vst [vmem:[%s208] sm:%s200] %v209
                %v211 = vld [vmem:[%s207 + $0x10] sm:%s200]
                %212 = vst [vmem:[%s208 + $0x8] sm:%s200] %v211
                %v213 = vld [vmem:[%s207 + $0x20] sm:%s200]
                %214 = vst [vmem:[%s208 + $0x10] sm:%s200] %v213
                %v215 = vld [vmem:[%s207 + $0x30] sm:%s200]
                %216 = vst [vmem:[%s208 + $0x18] sm:%s200] %v215
                %v217 = vld [vmem:[%s207 + $0x40] sm:%s200]
                %218 = vst [vmem:[%s208 + $0x20] sm:%s200] %v217
                %v219 = vld [vmem:[%s207 + $0x50] sm:%s200]
                %220 = vst [vmem:[%s208 + $0x28] sm:%s200] %v219
                %v221 = vld [vmem:[%s207 + $0x60] sm:%s200]
                %222 = vst [vmem:[%s208 + $0x30] sm:%s200] %v221
                %v223 = vld [vmem:[%s207 + $0x70] sm:%s200]
                %224 = vst [vmem:[%s208 + $0x38] sm:%s200] %v223
                %v225 = vld [vmem:[%s207 + $0x80] sm:%s200]
                %226 = vst [vmem:[%s208 + $0x40] sm:%s200] %v225
              $region45: #{complex_unet_up.1} parent=39 // loop_footer
                %s206 = sadd.s32 1, %s202
              $region46: #{complex_unet_up.1} parent=39 // loop_footer_branch
                %201 = sbr.rel target = $region42
              $region47: #{complex_unet_up.1} parent=39 // loop_exit
                _
            $region40: #{complex_unet_up.1} parent=31 // pred_fallthru
              _
          $region32: #{complex_unet_up.1} parent=27 // pred_fallthru
            _
          %257 = vnop
        $region28: #{complex_unet_up.1} parent=23 // pred_fallthru
          _
      $region24: #{complex_unet_up.1} parent=5 // pred_fallthru
        _
      %p258 = scmp.le.s32.totalorder 1, %s12
      %p259 = scmp.lt.s32.totalorder %s12, 3
      %p260 = pnand %p258, %p259
      %p261 = pneg %p260
      // Predicated region
      $region63: #{complex_unet_up.1} parent=5 // pred_check
        _
      $region64: #{complex_unet_up.1} parent=5 // pred_check_branch
        %263 = sbr.rel (%p260) target = $region66
      $region65: #{complex_unet_up.1} parent=5 // pred_region
        %s264 = ssub.s32 %s12, 1
        %s265 = sand.u32 %s25, 1
        %s266 = sand.u32 %s25, 1
        %s267 = smul.addr %s266, 72
        %s268 = scalar_lea.vmem [#allocation2], %s267
        // Predicated region
        $region67: #{complex_unet_up.1} parent=65 // pred_check
          %p269 = pneg %p38
        $region68: #{complex_unet_up.1} parent=65 // pred_check_branch
          %271 = sbr.rel (%p269) target = $region70
        $region69: #{complex_unet_up.1} parent=65 // pred_region
          _
        $region70: #{complex_unet_up.1} parent=65 // pred_fallthru
          _
        %s272 = sand.u32 %s25, 1
        %s273 = sand.u32 %s25, 1
        %s274 = smul.addr %s273, 72
        %s275 = scalar_lea.vmem [#allocation2], %s274
        %p276 = pneg %p38
        %p277 = pneg %p35
        %p278 = pneg %p59
        %p279 = pneg %p56
        %p280 = pneg %p80
        %p281 = pneg %p77
        %p282 = pneg %p106
        %p283 = pneg %p103
        %s284 = sand.u32 %s93, 1
        %s285 = sand.u32 %s93, 1
        %s286 = smul.addr %s285, 32
        %s287 = scalar_lea.vmem [#allocation3], %s286
        %p288 = pneg %p132
        %p289 = pneg %p129
        %s290 = sand.u32 %s119, 1
        %s291 = sand.u32 %s119, 1
        %s292 = smul.addr %s291, 32
        %s293 = scalar_lea.vmem [#allocation4], %s292
        %p294 = pneg %p158
        %p295 = pneg %p155
        %p296 = scmp.lt.s32.totalorder %s17, 1
        %s297 = scalar_select %p296, %s17, 1
        %s298 = smul.addr %s297, 4
        %s299 = smul.addr %s298, 8
        %s300 = scalar_lea.vmem %s5, %s299
        %s301 = smul.u32 2, %s17
        %s302 = smul.u32 2, %s17
        %s303 = smul.u32 2, %s17
        %p304 = scmp.lt.s32.totalorder %s17, 1
        %s305 = scalar_select %p304, %s17, 1
        %s306 = smul.addr %s305, 4
        %s307 = smul.addr %s306, 8
        %s308 = scalar_lea.vmem %s5, %s307
        %v310 = vld [vmem:[%s268] sm:$0xff]
        %v311 = vld [vmem:[%s268 + $0x8] sm:$0xff]
        %v312 = vld [vmem:[%s268 + $0x10] sm:$0xff]
        %v313 = vld [vmem:[%s268 + $0x18] sm:$0xff]
        %v314 = vld [vmem:[%s268 + $0x20] sm:$0xff]
        %v315 = vld [vmem:[%s268 + $0x28] sm:$0xff]
        %v316 = vld [vmem:[%s268 + $0x30] sm:$0xff]
        %v317 = vld [vmem:[%s268 + $0x38] sm:$0xff]
        %v318 = vld [vmem:[%s268 + $0x40] sm:$0xff]
        %v319 = vld [vmem:[%s1] sm:$0xf]
        %v320 = vld [vmem:[%s1 + $0x4] sm:$0xf]
        %v321 = vld [vmem:[%s1 + $0x8] sm:$0xf]
        %v322 = vld [vmem:[%s1 + $0xc] sm:$0xf]
        %v327 = vunpack.c.l.b16 %v319
        %v328 = vunpack.c.l.b16 %v320
        %v329 = vunpack.c.l.b16 %v321
        %v330 = vunpack.c.l.b16 %v322
        %v331 = vpack.c.b16 %v328, %v327
        %v332 = vpack.c.b16 %v330, %v329
        %v342 = vunpack.c.l.b16 %v310
        %v343 = vunpack.c.h.b16 %v310
        %v344 = vunpack.c.l.b16 %v311
        %v345 = vunpack.c.h.b16 %v311
        %v346 = vunpack.c.l.b16 %v312
        %v347 = vunpack.c.h.b16 %v312
        %v348 = vunpack.c.l.b16 %v313
        %v349 = vunpack.c.h.b16 %v313
        %v350 = vunpack.c.l.b16 %v314
        %v351 = vunpack.c.h.b16 %v314
        %v352 = vunpack.c.l.b16 %v315
        %v353 = vunpack.c.h.b16 %v315
        %v354 = vunpack.c.l.b16 %v316
        %v355 = vunpack.c.h.b16 %v316
        %v356 = vunpack.c.l.b16 %v317
        %v357 = vunpack.c.h.b16 %v317
        %v358 = vunpack.c.l.b16 %v318
        %v359 = vunpack.c.h.b16 %v318
        %v360 = vpack.c.b16 %v344, %v342
        %v361 = vpack.c.b16 %v345, %v343
        %v362 = vpack.c.b16 %v348, %v346
        %v363 = vpack.c.b16 %v349, %v347
        %v364 = vpack.c.b16 %v352, %v350
        %v365 = vpack.c.b16 %v353, %v351
        %v366 = vpack.c.b16 %v356, %v354
        %v367 = vpack.c.b16 %v357, %v355
        %v368 = vpack.c.b16 %v358, %v358
        %v369 = vpack.c.b16 %v359, %v359
        %vm378 = vcmask 588800
        %v380 = vsel %vm378, %v331, 0
        %v383 = vsel %vm378, %v332, 0
        %vm385 = vcmask 1043456
        %v387 = vsel %vm385, %v368, 0
        %v390 = vsel %vm385, %v369, 0
        %392 = vmatprep.subr.bf16.mxu0 0
        %393 = vmatpush1.bf16.msra.mxu0 0
        %394 = vmatprep.subr.bf16.mxu0 0
        %395 = vmatpush1.bf16.msra.mxu0 0
        %396 = vmatprep.subr.bf16.mxu0 0
        %397 = vmatpush1.bf16.msra.mxu0 0
        %398 = vmatprep.subr.bf16.mxu0 %v390
        %399 = vmatpush1.bf16.msra.mxu0 %v387
        %400 = vmatprep.subr.bf16.mxu0 %v367
        %401 = vmatpush1.bf16.msra.mxu0 %v366
        %402 = vmatprep.subr.bf16.mxu0 %v365
        %403 = vmatpush1.bf16.msra.mxu0 %v364
        %404 = vmatprep.subr.bf16.mxu0 %v363
        %405 = vmatpush1.bf16.msra.mxu0 %v362
        %406 = vmatprep.subr.bf16.mxu0 %v361
        %407 = vmatpush1.bf16.msra.mxu0 %v360
        %408 = vmatprep.subr.bf16.mxu0 0
        %409 = vmatpush2.bf16.msra.mxu0 0
        %410 = vmatprep.subr.bf16.mxu0 0
        %411 = vmatpush2.bf16.msra.mxu0 0
        %412 = vmatprep.subr.bf16.mxu0 0
        %413 = vmatpush2.bf16.msra.mxu0 0
        %414 = vmatprep.subr.bf16.mxu0 0
        %415 = vmatpush2.bf16.msra.mxu0 0
        %416 = vmatprep.subr.bf16.mxu0 0
        %417 = vmatpush2.bf16.msra.mxu0 0
        %418 = vmatprep.subr.bf16.mxu0 0
        %419 = vmatpush2.bf16.msra.mxu0 0
        %420 = vmatprep.subr.bf16.mxu0 0
        %421 = vmatpush2.bf16.msra.mxu0 0
        %422 = vmatprep.subr.bf16.mxu0 0
        %423 = vmatpush2.bf16.msra.mxu0 0
        %424 = vmatprep.mubr.bf16.mxu0 0
        %425 = vmatmul.mubr.bf16.gmra.mxu0 %v380
        %v426 = vpop.f32.mrf.mxu0
        %v427 = vadd.f32 0.0, %v426
        %v428 = vpop.f32.mrf.mxu0
        %v429 = vadd.f32 0.0, %v428
        %v430 = vpop.f32.mrf.mxu0
        %v431 = vadd.f32 0.0, %v430
        %v432 = vpop.f32.mrf.mxu0
        %v433 = vadd.f32 0.0, %v432
        %434 = vmatprep.mubr.bf16.mxu0 0
        %435 = vmatmul.mubr.bf16.gmra.mxu0 %v383
        %v436 = vpop.f32.mrf.mxu0
        %v437 = vadd.f32 0.0, %v436
        %v438 = vpop.f32.mrf.mxu0
        %v439 = vadd.f32 0.0, %v438
        %v440 = vpop.f32.mrf.mxu0
        %v441 = vadd.f32 0.0, %v440
        %v442 = vpop.f32.mrf.mxu0
        %v443 = vadd.f32 0.0, %v442
        %444 = vdwg.mxu0
        %v445 = vld [vmem:[%s2] sm:$0xf]
        %v446 = vld [vmem:[%s2 + $0x4] sm:$0xf]
        %v447 = vld [vmem:[%s2 + $0x8] sm:$0xf]
        %v448 = vld [vmem:[%s2 + $0xc] sm:$0xf]
        %v453 = vunpack.c.l.b16 %v445
        %v454 = vunpack.c.l.b16 %v446
        %v455 = vunpack.c.l.b16 %v447
        %v456 = vunpack.c.l.b16 %v448
        %v457 = vpack.c.b16 %v454, %v453
        %v458 = vpack.c.b16 %v456, %v455
        %v460 = vsel %vm378, %v457, 0
        %v463 = vsel %vm378, %v458, 0
        %465 = vmatprep.subr.bf16.mxu0 0
        %466 = vmatpush1.bf16.msra.mxu0 0
        %467 = vmatprep.subr.bf16.mxu0 0
        %468 = vmatpush1.bf16.msra.mxu0 0
        %469 = vmatprep.subr.bf16.mxu0 0
        %470 = vmatpush1.bf16.msra.mxu0 0
        %471 = vmatprep.subr.bf16.mxu0 %v390
        %472 = vmatpush1.bf16.msra.mxu0 %v387
        %473 = vmatprep.subr.bf16.mxu0 %v367
        %474 = vmatpush1.bf16.msra.mxu0 %v366
        %475 = vmatprep.subr.bf16.mxu0 %v365
        %476 = vmatpush1.bf16.msra.mxu0 %v364
        %477 = vmatprep.subr.bf16.mxu0 %v363
        %478 = vmatpush1.bf16.msra.mxu0 %v362
        %479 = vmatprep.subr.bf16.mxu0 %v361
        %480 = vmatpush1.bf16.msra.mxu0 %v360
        %481 = vmatprep.subr.bf16.mxu0 0
        %482 = vmatpush2.bf16.msra.mxu0 0
        %483 = vmatprep.subr.bf16.mxu0 0
        %484 = vmatpush2.bf16.msra.mxu0 0
        %485 = vmatprep.subr.bf16.mxu0 0
        %486 = vmatpush2.bf16.msra.mxu0 0
        %487 = vmatprep.subr.bf16.mxu0 0
        %488 = vmatpush2.bf16.msra.mxu0 0
        %489 = vmatprep.subr.bf16.mxu0 0
        %490 = vmatpush2.bf16.msra.mxu0 0
        %491 = vmatprep.subr.bf16.mxu0 0
        %492 = vmatpush2.bf16.msra.mxu0 0
        %493 = vmatprep.subr.bf16.mxu0 0
        %494 = vmatpush2.bf16.msra.mxu0 0
        %495 = vmatprep.subr.bf16.mxu0 0
        %496 = vmatpush2.bf16.msra.mxu0 0
        %497 = vmatprep.mubr.bf16.mxu0 0
        %498 = vmatmul.mubr.bf16.gmra.mxu0 %v460
        %v499 = vpop.f32.mrf.mxu0
        %v500 = vadd.f32 0.0, %v499
        %v501 = vpop.f32.mrf.mxu0
        %v502 = vadd.f32 0.0, %v501
        %v503 = vpop.f32.mrf.mxu0
        %v504 = vadd.f32 0.0, %v503
        %v505 = vpop.f32.mrf.mxu0
        %v506 = vadd.f32 0.0, %v505
        %507 = vmatprep.mubr.bf16.mxu0 0
        %508 = vmatmul.mubr.bf16.gmra.mxu0 %v463
        %v509 = vpop.f32.mrf.mxu0
        %v510 = vadd.f32 0.0, %v509
        %v511 = vpop.f32.mrf.mxu0
        %v512 = vadd.f32 0.0, %v511
        %v513 = vpop.f32.mrf.mxu0
        %v514 = vadd.f32 0.0, %v513
        %v515 = vpop.f32.mrf.mxu0
        %v516 = vadd.f32 0.0, %v515
        %517 = vdwg.mxu0
        %v518 = vadd.f32 %v427, %v429
        %519 = vadd.xlane.f32.xlu0 %v518
        %v520 = vpop.xlane.xlu0 %519
        %v521 = vadd.f32 %v431, %v433
        %522 = vadd.xlane.f32.xlu0 %v521
        %v523 = vpop.xlane.xlu0 %522
        %v524 = vadd.f32 %v437, %v439
        %525 = vadd.xlane.f32.xlu0 %v524
        %v526 = vpop.xlane.xlu0 %525
        %v527 = vadd.f32 %v441, %v443
        %528 = vadd.xlane.f32.xlu0 %v527
        %v529 = vpop.xlane.xlu0 %528
        %v530 = vmul.f32 %v427, %v427
        %v531 = vmul.f32 %v429, %v429
        %v532 = vmul.f32 %v431, %v431
        %v533 = vmul.f32 %v433, %v433
        %v534 = vmul.f32 %v437, %v437
        %v535 = vmul.f32 %v439, %v439
        %v536 = vmul.f32 %v441, %v441
        %v537 = vmul.f32 %v443, %v443
        %v538 = vadd.f32 %v530, %v531
        %539 = vadd.xlane.f32.xlu0 %v538
        %v540 = vpop.xlane.xlu0 %539
        %v541 = vadd.f32 %v532, %v533
        %542 = vadd.xlane.f32.xlu0 %v541
        %v543 = vpop.xlane.xlu0 %542
        %v544 = vadd.f32 %v534, %v535
        %545 = vadd.xlane.f32.xlu0 %v544
        %v546 = vpop.xlane.xlu0 %545
        %v547 = vadd.f32 %v536, %v537
        %548 = vadd.xlane.f32.xlu0 %v547
        %v549 = vpop.xlane.xlu0 %548
        %v550 = vadd.f32 %v500, %v502
        %551 = vadd.xlane.f32.xlu0 %v550
        %v552 = vpop.xlane.xlu0 %551
        %v553 = vadd.f32 %v504, %v506
        %554 = vadd.xlane.f32.xlu0 %v553
        %v555 = vpop.xlane.xlu0 %554
        %v556 = vadd.f32 %v510, %v512
        %557 = vadd.xlane.f32.xlu0 %v556
        %v558 = vpop.xlane.xlu0 %557
        %v559 = vadd.f32 %v514, %v516
        %560 = vadd.xlane.f32.xlu0 %v559
        %v561 = vpop.xlane.xlu0 %560
        %v562 = vmul.f32 %v500, %v500
        %v563 = vmul.f32 %v502, %v502
        %v564 = vmul.f32 %v504, %v504
        %v565 = vmul.f32 %v506, %v506
        %v566 = vmul.f32 %v510, %v510
        %v567 = vmul.f32 %v512, %v512
        %v568 = vmul.f32 %v514, %v514
        %v569 = vmul.f32 %v516, %v516
        %v570 = vadd.f32 %v562, %v563
        %571 = vadd.xlane.f32.xlu0 %v570
        %v572 = vpop.xlane.xlu0 %571
        %v573 = vadd.f32 %v564, %v565
        %574 = vadd.xlane.f32.xlu0 %v573
        %v575 = vpop.xlane.xlu0 %574
        %v576 = vadd.f32 %v566, %v567
        %577 = vadd.xlane.f32.xlu0 %v576
        %v578 = vpop.xlane.xlu0 %577
        %v579 = vadd.f32 %v568, %v569
        %580 = vadd.xlane.f32.xlu0 %v579
        %v581 = vpop.xlane.xlu0 %580
        %vm582 = vcmask 7168
        %v583 = vsel %vm582, %v520, %v540
        %v584 = vsel %vm582, %v523, %v543
        %v585 = vsel %vm582, %v526, %v546
        %v586 = vsel %vm582, %v529, %v549
        %vm587 = vcmask 15360
        %v588 = vsel %vm587, %v583, %v552
        %v589 = vsel %vm587, %v584, %v555
        %v590 = vsel %vm587, %v585, %v558
        %v591 = vsel %vm587, %v586, %v561
        %vm592 = vcmask 23552
        %v593 = vsel %vm592, %v588, %v572
        %v594 = vsel %vm592, %v589, %v575
        %v595 = vsel %vm592, %v590, %v578
        %v596 = vsel %vm592, %v591, %v581
        %vm597 = vcmask 31744
        %598 = vst.msk [vmem:[%s308] sm:$0xff] %vm597, %v593
        %599 = vst.msk [vmem:[%s308 + $0x8] sm:$0xff] %vm597, %v594
        %600 = vst.msk [vmem:[%s308 + $0x10] sm:$0xff] %vm597, %v595
        %601 = vst.msk [vmem:[%s308 + $0x18] sm:$0xff] %vm597, %v596
        %v602 = vpack.c.bf16 %v431, %v427
        %v603 = vpack.c.bf16 %v433, %v429
        %v604 = vpack.c.bf16 %v441, %v437
        %v605 = vpack.c.bf16 %v443, %v439
        %v610 = vunpack.c.l.b16 %v602
        %v611 = vunpack.c.l.b16 %v603
        %v612 = vunpack.c.h.b16 %v602
        %v613 = vunpack.c.h.b16 %v603
        %v614 = vunpack.c.l.b16 %v604
        %v615 = vunpack.c.l.b16 %v605
        %v616 = vunpack.c.h.b16 %v604
        %v617 = vunpack.c.h.b16 %v605
        %v618 = vpack.c.b16 %v611, %v610
        %v619 = vpack.c.b16 %v613, %v612
        %v620 = vpack.c.b16 %v615, %v614
        %v621 = vpack.c.b16 %v617, %v616
        %626 = vst [vmem:[%s287] sm:$0xff] %v618
        %627 = vst [vmem:[%s287 + $0x8] sm:$0xff] %v619
        %628 = vst [vmem:[%s287 + $0x10] sm:$0xff] %v620
        %629 = vst [vmem:[%s287 + $0x18] sm:$0xff] %v621
        %v630 = vpack.c.bf16 %v504, %v500
        %v631 = vpack.c.bf16 %v506, %v502
        %v632 = vpack.c.bf16 %v514, %v510
        %v633 = vpack.c.bf16 %v516, %v512
        %v638 = vunpack.c.l.b16 %v630
        %v639 = vunpack.c.l.b16 %v631
        %v640 = vunpack.c.h.b16 %v630
        %v641 = vunpack.c.h.b16 %v631
        %v642 = vunpack.c.l.b16 %v632
        %v643 = vunpack.c.l.b16 %v633
        %v644 = vunpack.c.h.b16 %v632
        %v645 = vunpack.c.h.b16 %v633
        %v646 = vpack.c.b16 %v639, %v638
        %v647 = vpack.c.b16 %v641, %v640
        %v648 = vpack.c.b16 %v643, %v642
        %v649 = vpack.c.b16 %v645, %v644
        %654 = vst [vmem:[%s293] sm:$0xff] %v646
        %655 = vst [vmem:[%s293 + $0x8] sm:$0xff] %v647
        %656 = vst [vmem:[%s293 + $0x10] sm:$0xff] %v648
        %657 = vst [vmem:[%s293 + $0x18] sm:$0xff] %v649
        %s658 = sand.u32 %s93, 1
        %s659 = sand.u32 %s93, 1
        %s660 = smul.addr %s659, 32
        %s661 = scalar_lea.vmem [#allocation3], %s660
        %s662 = sand.u32 %s119, 1
        %s663 = sand.u32 %s119, 1
        %s664 = smul.addr %s663, 32
        %s665 = scalar_lea.vmem [#allocation4], %s664
        %p666 = scmp.lt.s32.totalorder %s17, 1
        %s667 = scalar_select %p666, %s17, 1
        %s668 = smul.addr %s667, 4
        %s669 = smul.addr %s668, 8
        %s670 = scalar_lea.vmem %s5, %s669
        // Predicated region
        $region71: #{complex_unet_up.1} parent=65 // pred_check
          %p671 = pneg %p103
        $region72: #{complex_unet_up.1} parent=65 // pred_check_branch
          %673 = sbr.rel (%p671) target = $region74
        $region73: #{complex_unet_up.1} parent=65 // pred_region
          %s674 = smul.u32 2, %s17
          %s675 = smul.addr %s674, 4
          %s676 = scalar_lea.vmem %s3, %s675
          // Predicated region
          $region75: #{complex_unet_up.1} parent=73 // pred_check
            _
          $region76: #{complex_unet_up.1} parent=73 // pred_check_branch
            %678 = sbr.rel (0) target = $region78
          $region77: #{complex_unet_up.1} parent=73 // pred_region
            // Predicated region
            $region79: #{complex_unet_up.1} parent=77 // pred_check
              _
            $region80: #{complex_unet_up.1} parent=77 // pred_check_branch
              %680 = sbr.rel (0) target = $region82
            $region81: #{complex_unet_up.1} parent=77 // pred_region
              // Predicated region
              $region94: #{complex_unet_up.1} parent=81 // pred_check
                _
              $region95: #{complex_unet_up.1} parent=81 // pred_check_branch
                %702 = sbr.rel (0) target = $region97
              $region96: #{complex_unet_up.1} parent=81 // pred_region
                loop: start=0, step=1, limit=1
                $region98: #{complex_unet_up.1} parent=96 // loop_pre_header
                  _
                $region99: #{complex_unet_up.1} parent=96 // loop_header
                  %s704 = sphi 0, %s708
                  %p705 = scmp.ge.s32.totalorder %s704, 1
                  %s709 = sphi %s661, %s661
                  %s710 = sphi %s676, %s676
                $region100: #{complex_unet_up.1} parent=96 // loop_header_branch
                  %707 = sbr.rel (%p705) target = $region104
                $region101: #{complex_unet_up.1} parent=96 // loop_body
                  %v711 = vld [vmem:[%s709] sm:$0xff]
                  %712 = vst [vmem:[%s710] sm:$0xff] %v711
                  %v713 = vld [vmem:[%s709 + $0x8] sm:$0xff]
                  %714 = vst [vmem:[%s710 + $0x10] sm:$0xff] %v713
                  %v715 = vld [vmem:[%s709 + $0x10] sm:$0xff]
                  %716 = vst [vmem:[%s710 + $0x20] sm:$0xff] %v715
                  %v717 = vld [vmem:[%s709 + $0x18] sm:$0xff]
                  %718 = vst [vmem:[%s710 + $0x30] sm:$0xff] %v717
                $region102: #{complex_unet_up.1} parent=96 // loop_footer
                  %s708 = sadd.s32 1, %s704
                $region103: #{complex_unet_up.1} parent=96 // loop_footer_branch
                  %703 = sbr.rel target = $region99
                $region104: #{complex_unet_up.1} parent=96 // loop_exit
                  _
              $region97: #{complex_unet_up.1} parent=81 // pred_fallthru
                _
              // Predicated region
              $region105: #{complex_unet_up.1} parent=81 // pred_check
                _
              $region106: #{complex_unet_up.1} parent=81 // pred_check_branch
                %720 = sbr.rel target = $region108
              $region107: #{complex_unet_up.1} parent=81 // pred_region
                _
              $region108: #{complex_unet_up.1} parent=81 // pred_fallthru
                _
            $region82: #{complex_unet_up.1} parent=77 // pred_fallthru
              _
            // Predicated region
            $region83: #{complex_unet_up.1} parent=77 // pred_check
              _
            $region84: #{complex_unet_up.1} parent=77 // pred_check_branch
              %682 = sbr.rel target = $region86
            $region85: #{complex_unet_up.1} parent=77 // pred_region
              %s684 = ssub.s32 256, 1
              loop: start=0, step=1, limit=1
              $region87: #{complex_unet_up.1} parent=85 // loop_pre_header
                _
              $region88: #{complex_unet_up.1} parent=85 // loop_header
                %s686 = sphi 0, %s690
                %p687 = scmp.ge.s32.totalorder %s686, 1
                %s691 = sphi %s661, %s661
                %s692 = sphi %s676, %s676
              $region89: #{complex_unet_up.1} parent=85 // loop_header_branch
                %689 = sbr.rel (%p687) target = $region93
              $region90: #{complex_unet_up.1} parent=85 // loop_body
                %v693 = vld [vmem:[%s691] sm:%s684]
                %694 = vst [vmem:[%s692] sm:%s684] %v693
                %v695 = vld [vmem:[%s691 + $0x8] sm:%s684]
                %696 = vst [vmem:[%s692 + $0x10] sm:%s684] %v695
                %v697 = vld [vmem:[%s691 + $0x10] sm:%s684]
                %698 = vst [vmem:[%s692 + $0x20] sm:%s684] %v697
                %v699 = vld [vmem:[%s691 + $0x18] sm:%s684]
                %700 = vst [vmem:[%s692 + $0x30] sm:%s684] %v699
              $region91: #{complex_unet_up.1} parent=85 // loop_footer
                %s690 = sadd.s32 1, %s686
              $region92: #{complex_unet_up.1} parent=85 // loop_footer_branch
                %685 = sbr.rel target = $region88
              $region93: #{complex_unet_up.1} parent=85 // loop_exit
                _
            $region86: #{complex_unet_up.1} parent=77 // pred_fallthru
              _
          $region78: #{complex_unet_up.1} parent=73 // pred_fallthru
            _
          %721 = vnop
        $region74: #{complex_unet_up.1} parent=65 // pred_fallthru
          _
        // Predicated region
        $region109: #{complex_unet_up.1} parent=65 // pred_check
          %p722 = pneg %p129
        $region110: #{complex_unet_up.1} parent=65 // pred_check_branch
          %724 = sbr.rel (%p722) target = $region112
        $region111: #{complex_unet_up.1} parent=65 // pred_region
          %s725 = smul.u32 2, %s17
          %s726 = smul.addr %s725, 4
          %s727 = scalar_lea.vmem %s4, %s726
          // Predicated region
          $region113: #{complex_unet_up.1} parent=111 // pred_check
            _
          $region114: #{complex_unet_up.1} parent=111 // pred_check_branch
            %729 = sbr.rel (0) target = $region116
          $region115: #{complex_unet_up.1} parent=111 // pred_region
            // Predicated region
            $region117: #{complex_unet_up.1} parent=115 // pred_check
              _
            $region118: #{complex_unet_up.1} parent=115 // pred_check_branch
              %731 = sbr.rel (0) target = $region120
            $region119: #{complex_unet_up.1} parent=115 // pred_region
              // Predicated region
              $region132: #{complex_unet_up.1} parent=119 // pred_check
                _
              $region133: #{complex_unet_up.1} parent=119 // pred_check_branch
                %753 = sbr.rel (0) target = $region135
              $region134: #{complex_unet_up.1} parent=119 // pred_region
                loop: start=0, step=1, limit=1
                $region136: #{complex_unet_up.1} parent=134 // loop_pre_header
                  _
                $region137: #{complex_unet_up.1} parent=134 // loop_header
                  %s755 = sphi 0, %s759
                  %p756 = scmp.ge.s32.totalorder %s755, 1
                  %s760 = sphi %s665, %s665
                  %s761 = sphi %s727, %s727
                $region138: #{complex_unet_up.1} parent=134 // loop_header_branch
                  %758 = sbr.rel (%p756) target = $region142
                $region139: #{complex_unet_up.1} parent=134 // loop_body
                  %v762 = vld [vmem:[%s760] sm:$0xff]
                  %763 = vst [vmem:[%s761] sm:$0xff] %v762
                  %v764 = vld [vmem:[%s760 + $0x8] sm:$0xff]
                  %765 = vst [vmem:[%s761 + $0x10] sm:$0xff] %v764
                  %v766 = vld [vmem:[%s760 + $0x10] sm:$0xff]
                  %767 = vst [vmem:[%s761 + $0x20] sm:$0xff] %v766
                  %v768 = vld [vmem:[%s760 + $0x18] sm:$0xff]
                  %769 = vst [vmem:[%s761 + $0x30] sm:$0xff] %v768
                $region140: #{complex_unet_up.1} parent=134 // loop_footer
                  %s759 = sadd.s32 1, %s755
                $region141: #{complex_unet_up.1} parent=134 // loop_footer_branch
                  %754 = sbr.rel target = $region137
                $region142: #{complex_unet_up.1} parent=134 // loop_exit
                  _
              $region135: #{complex_unet_up.1} parent=119 // pred_fallthru
                _
              // Predicated region
              $region143: #{complex_unet_up.1} parent=119 // pred_check
                _
              $region144: #{complex_unet_up.1} parent=119 // pred_check_branch
                %771 = sbr.rel target = $region146
              $region145: #{complex_unet_up.1} parent=119 // pred_region
                _
              $region146: #{complex_unet_up.1} parent=119 // pred_fallthru
                _
            $region120: #{complex_unet_up.1} parent=115 // pred_fallthru
              _
            // Predicated region
            $region121: #{complex_unet_up.1} parent=115 // pred_check
              _
            $region122: #{complex_unet_up.1} parent=115 // pred_check_branch
              %733 = sbr.rel target = $region124
            $region123: #{complex_unet_up.1} parent=115 // pred_region
              %s735 = ssub.s32 256, 1
              loop: start=0, step=1, limit=1
              $region125: #{complex_unet_up.1} parent=123 // loop_pre_header
                _
              $region126: #{complex_unet_up.1} parent=123 // loop_header
                %s737 = sphi 0, %s741
                %p738 = scmp.ge.s32.totalorder %s737, 1
                %s742 = sphi %s665, %s665
                %s743 = sphi %s727, %s727
              $region127: #{complex_unet_up.1} parent=123 // loop_header_branch
                %740 = sbr.rel (%p738) target = $region131
              $region128: #{complex_unet_up.1} parent=123 // loop_body
                %v744 = vld [vmem:[%s742] sm:%s735]
                %745 = vst [vmem:[%s743] sm:%s735] %v744
                %v746 = vld [vmem:[%s742 + $0x8] sm:%s735]
                %747 = vst [vmem:[%s743 + $0x10] sm:%s735] %v746
                %v748 = vld [vmem:[%s742 + $0x10] sm:%s735]
                %749 = vst [vmem:[%s743 + $0x20] sm:%s735] %v748
                %v750 = vld [vmem:[%s742 + $0x18] sm:%s735]
                %751 = vst [vmem:[%s743 + $0x30] sm:%s735] %v750
              $region129: #{complex_unet_up.1} parent=123 // loop_footer
                %s741 = sadd.s32 1, %s737
              $region130: #{complex_unet_up.1} parent=123 // loop_footer_branch
                %736 = sbr.rel target = $region126
              $region131: #{complex_unet_up.1} parent=123 // loop_exit
                _
            $region124: #{complex_unet_up.1} parent=115 // pred_fallthru
              _
          $region116: #{complex_unet_up.1} parent=111 // pred_fallthru
            _
          %772 = vnop
        $region112: #{complex_unet_up.1} parent=65 // pred_fallthru
          _
        // Predicated region
        $region147: #{complex_unet_up.1} parent=65 // pred_check
          %p773 = pneg %p155
        $region148: #{complex_unet_up.1} parent=65 // pred_check_branch
          %775 = sbr.rel (%p773) target = $region150
        $region149: #{complex_unet_up.1} parent=65 // pred_region
          _
        $region150: #{complex_unet_up.1} parent=65 // pred_fallthru
          _
      $region66: #{complex_unet_up.1} parent=5 // pred_fallthru
        _
      %p776 = scmp.le.s32.totalorder 2, %s12
      // Predicated region
      $region151: #{complex_unet_up.1} parent=5 // pred_check
        %p777 = pneg %p776
      $region152: #{complex_unet_up.1} parent=5 // pred_check_branch
        %779 = sbr.rel (%p777) target = $region154
      $region153: #{complex_unet_up.1} parent=5 // pred_region
        %s780 = ssub.s32 %s12, 2
        // Predicated region
        $region155: #{complex_unet_up.1} parent=153 // pred_check
          %p781 = pneg %p109
        $region156: #{complex_unet_up.1} parent=153 // pred_check_branch
          %783 = sbr.rel (%p781) target = $region158
        $region157: #{complex_unet_up.1} parent=153 // pred_region
          %s784 = sand.u32 %s94, 1
          %s785 = sand.u32 %s94, 1
          %s786 = smul.addr %s785, 32
          %s787 = scalar_lea.vmem [#allocation3], %s786
        $region158: #{complex_unet_up.1} parent=153 // pred_fallthru
          _
        // Predicated region
        $region159: #{complex_unet_up.1} parent=153 // pred_check
          %p788 = pneg %p135
        $region160: #{complex_unet_up.1} parent=153 // pred_check_branch
          %790 = sbr.rel (%p788) target = $region162
        $region161: #{complex_unet_up.1} parent=153 // pred_region
          %s791 = sand.u32 %s120, 1
          %s792 = sand.u32 %s120, 1
          %s793 = smul.addr %s792, 32
          %s794 = scalar_lea.vmem [#allocation4], %s793
        $region162: #{complex_unet_up.1} parent=153 // pred_fallthru
          _
        // Predicated region
        $region163: #{complex_unet_up.1} parent=153 // pred_check
          %p795 = pneg %p161
        $region164: #{complex_unet_up.1} parent=153 // pred_check_branch
          %797 = sbr.rel (%p795) target = $region166
        $region165: #{complex_unet_up.1} parent=153 // pred_region
          %p798 = scmp.lt.s32.totalorder %s18, 1
          %s799 = scalar_select %p798, %s18, 1
          %s800 = smul.addr %s799, 4
          %s801 = smul.addr %s800, 8
          %s802 = scalar_lea.vmem %s5, %s801
        $region166: #{complex_unet_up.1} parent=153 // pred_fallthru
          _
      $region154: #{complex_unet_up.1} parent=5 // pred_fallthru
        _
    $region6: #{complex_unet_up.1} parent=1 // loop_footer
      %s16 = sadd.s32 1, %s12
    $region7: #{complex_unet_up.1} parent=1 // loop_footer_branch
      %11 = sbr.rel target = $region3
    $region8: #{complex_unet_up.1} parent=1 // loop_exit
      _

</llo_original>
